<compile_context>
chip_gen: v5e
topology: v5e:2x2
jax: 0.10.0
libtpu: 0.0.40
codegen_flags: <defaults>
</compile_context>

<pallas_src>
import functools

import jax
import jax.numpy as jnp
import numpy as np
from jax.experimental import pallas as pl
from jax.experimental.pallas import tpu as pltpu


def _round_up(x, m):
    return ((x + m - 1) // m) * m


def _ms_loss_kernel(x_ref, mask_ref, o_ref, *, w):
    """One grid step: accumulate masked log(h^2 + v^2 + 1) for a (TM, Lp) slab of images."""

    @pl.when(pl.program_id(0) == 0)
    def _init():
        o_ref[...] = jnp.zeros_like(o_ref)

    x = x_ref[...].astype(jnp.float32)            # (TM, Lp); upcast in-kernel, DMA in native dtype
    tm, lanes = x.shape

    # Neighbour fetch along the flattened image row (lane axis only, single XLU rotate each):
    #   right[r, p] = x[r, p + 1 (mod lanes)]   -> shift = lanes - 1  (== -1)
    #   down [r, p] = x[r, p + w (mod lanes)]   -> shift = lanes - w  (== -w)
    right = pltpu.roll(x, lanes - 1, axis=1)
    down = pltpu.roll(x, lanes - w, axis=1)

    dh = x - right                                # kernel_h: x[i, j] - x[i, j + 1]
    dv = x - down                                 # kernel_v: x[i, j] - x[i + 1, j]

    # mask (1, Lp) == 1 on the valid conv window (rows 1..H-2, cols 1..W-2), 0 elsewhere;
    # it kills image borders, lane padding and all wrap-around roll neighbours.  Broadcast
    # over the TM rows of the tile (sublane broadcast, hoisted — computed once per step).
    vals = jnp.log(dh * dh + dv * dv + 1.0) * mask_ref[...]

    # In-register partial reduce over the row axis (pure VPU adds across vregs), then
    # accumulate into the small resident (8, Lp) output block.
    o_ref[...] += vals.reshape(tm // 8, 8, lanes).sum(axis=0)


def mumford_shah_loss(preds, *, tile_target_bytes=4 * 1024 * 1024):
    """preds: (B, C, H, W) array (instance map after relu). Returns the scalar MS loss."""
    B, C, H, W = preds.shape
    if H < 3 or W < 3:
        raise ValueError("MumfordShahLoss needs H >= 3 and W >= 3 (valid 3x3 conv).")

    N = B * C
    L = H * W
    x = preds.reshape(N, L)                       # free contiguous reshape, native dtype

    # Lane padding only if H*W is not already a multiple of 128 (no-op for the common case).
    Lp = _round_up(L, 128)

    # --- tiling: TM flattened images (rows) per grid step, a multiple of 8 sublanes --------
    itemsize = x.dtype.itemsize
    rows_budget = max(8, tile_target_bytes // max(1, Lp * itemsize))
    TM = max(8, min(_round_up(N, 8), (rows_budget // 8) * 8))
    T = pl.cdiv(N, TM)
    N_pad = T * TM
    # TODO(synk): for single images much larger than a few MiB (e.g. 4096x4096) the H axis
    # should also be tiled (1-row halo); mandatory to fit v7x's 64 MiB VMEM.

    if N_pad != N or Lp != L:
        # Zero padding is exact: padded images / lanes contribute log(0 + 0 + 1) = 0 inside
        # the mask window and are masked out elsewhere.
        x = jnp.pad(x, ((0, N_pad - N), (0, Lp - L)))

    # --- valid-window mask: a single (1, Lp) row, resident in VMEM --------------------------
    mask2d = np.zeros((H, W), np.float32)
    mask2d[1:H - 1, 1:W - 1] = 1.0
    mask = np.zeros((1, Lp), np.float32)
    mask[0, :L] = mask2d.reshape(-1)
    mask = jnp.asarray(mask)

    kernel = functools.partial(_ms_loss_kernel, w=W)
    partial_sums = pl.pallas_call(
        kernel,
        out_shape=jax.ShapeDtypeStruct((8, Lp), jnp.float32),
        grid=(T,),
        in_specs=[
            pl.BlockSpec((TM, Lp), lambda m: (m, 0)),   # image slab (native dtype)
            pl.BlockSpec((1, Lp), lambda m: (0, 0)),    # resident mask (tiny, not tiled by TM)
        ],
        out_specs=pl.BlockSpec((8, Lp), lambda m: (0, 0)),   # resident accumulator (KBs)
        compiler_params=pltpu.CompilerParams(
            dimension_semantics=("arbitrary",),
            vmem_limit_bytes=32 * 1024 * 1024,
        ),
    )(x, mask)
    # TODO(synk): on v7x, shard the T axis across the two TensorCores (CORE_PARALLEL leading
    # grid axis / pl.core_map) so each core streams its own half of the images.

    # Tiny final reduction + normalization (== PyTorch mean over (C, B, H-2, W-2)).
    return jnp.sum(partial_sums) / float(N * (H - 2) * (W - 2))


def _reference_loss(preds):
    """Pure-JAX reference matching the PyTorch forward exactly."""
    c = preds[:, :, 1:-1, 1:-1]
    r = preds[:, :, 1:-1, 2:]
    d = preds[:, :, 2:, 1:-1]
    h = c - r
    v = c - d
    return jnp.mean(jnp.log(h * h + v * v + 1.0))


if __name__ == "__main__":
    key = jax.random.PRNGKey(0)
    # "instance map after relu", small shapes: B=2, C=4, H=W=16
    preds = jax.nn.relu(jax.random.normal(key, (2, 4, 16, 16), dtype=jnp.float32))

    loss = mumford_shah_loss(preds)
    loss = jax.block_until_ready(loss)

    ref = _reference_loss(preds)
    assert jnp.allclose(loss, ref, rtol=1e-3, atol=1e-3), (float(loss), float(ref))

    print("KERNEL_OK")
</pallas_src>

<mosaic_0001>
module attributes {stable_mosaic.version = 11 : i64} {
  func.func @_ms_loss_kernel(%arg0: i32, %arg1: memref<8x256xf32, #tpu.memory_space<vmem>>, %arg2: memref<1x256xf32, #tpu.memory_space<vmem>>, %arg3: memref<8x256xf32, #tpu.memory_space<vmem>>) attributes {dimension_semantics = [#tpu.dimension_semantics<arbitrary>], iteration_bounds = array<i64: 1>, scalar_prefetch = 0 : i64, scratch_operands = 0 : i64, tpu.core_type = #tpu.core_type<tc>, window_params = [{transform_indices = @transform_0, window_bounds = array<i64: 8, 256>}, {pipeline_mode = #tpu.pipeline_mode<synchronous>, transform_indices = @transform_1, window_bounds = array<i64: 1, 256>}, {pipeline_mode = #tpu.pipeline_mode<synchronous>, transform_indices = @transform_2, window_bounds = array<i64: 8, 256>}]} {
    %c0_i32 = arith.constant 0 : i32
    %0 = arith.cmpi eq, %arg0, %c0_i32 : i32
    %1 = arith.extui %0 : i1 to i32
    %c0_i32_0 = arith.constant 0 : i32
    %2 = arith.cmpi ne, %1, %c0_i32_0 : i32
    scf.if %2 {
      %cst_9 = arith.constant 0.000000e+00 : f32
      %22 = vector.broadcast %cst_9 : f32 to vector<8x256xf32>
      %c0_10 = arith.constant 0 : index
      %c0_11 = arith.constant 0 : index
      %23 = vector.load %arg3[%c0_10, %c0_11] : memref<8x256xf32, #tpu.memory_space<vmem>>, vector<8x256xf32>
      tpu.vector_store %arg3[%c0_10, %c0_11], %22 {strides = array<i32>} : memref<8x256xf32, #tpu.memory_space<vmem>>, vector<8x256xf32>,
    } else {
    }
    %c0 = arith.constant 0 : index
    %c0_1 = arith.constant 0 : index
    %3 = vector.load %arg1[%c0, %c0_1] : memref<8x256xf32, #tpu.memory_space<vmem>>, vector<8x256xf32>
    %c255_i32 = arith.constant 255 : i32
    %4 = tpu.dynamic_rotate %3 by %c255_i32 dim 1 : vector<8x256xf32>, i32 -> vector<8x256xf32>
    %c240_i32 = arith.constant 240 : i32
    %5 = tpu.dynamic_rotate %3 by %c240_i32 dim 1 : vector<8x256xf32>, i32 -> vector<8x256xf32>
    %6 = arith.subf %3, %4 : vector<8x256xf32>
    %7 = arith.subf %3, %5 : vector<8x256xf32>
    %8 = arith.mulf %6, %6 : vector<8x256xf32>
    %9 = arith.mulf %7, %7 : vector<8x256xf32>
    %10 = arith.addf %8, %9 : vector<8x256xf32>
    %cst = arith.constant 1.000000e+00 : f32
    %11 = vector.broadcast %cst : f32 to vector<8x256xf32>
    %12 = arith.addf %10, %11 : vector<8x256xf32>
    %13 = math.log %12 : vector<8x256xf32>
    %c0_2 = arith.constant 0 : index
    %c0_3 = arith.constant 0 : index
    %14 = vector.load %arg2[%c0_2, %c0_3] : memref<1x256xf32, #tpu.memory_space<vmem>>, vector<1x256xf32>
    %15 = vector.broadcast %14 : vector<1x256xf32> to vector<8x256xf32>
    %16 = arith.mulf %13, %15 : vector<8x256xf32>
    %c0_4 = arith.constant 0 : index
    %c0_5 = arith.constant 0 : index
    %17 = vector.load %arg3[%c0_4, %c0_5] : memref<8x256xf32, #tpu.memory_space<vmem>>, vector<8x256xf32>
    %18 = vector.shape_cast %16 : vector<8x256xf32> to vector<1x8x256xf32>
    %cst_6 = arith.constant dense<0.000000e+00> : vector<8x256xf32>
    %19 = vector.multi_reduction <add>, %18, %cst_6 [0] : vector<1x8x256xf32> to vector<8x256xf32>
    %20 = arith.addf %17, %19 : vector<8x256xf32>
    %c0_7 = arith.constant 0 : index
    %c0_8 = arith.constant 0 : index
    %21 = vector.load %arg3[%c0_7, %c0_8] : memref<8x256xf32, #tpu.memory_space<vmem>>, vector<8x256xf32>
    tpu.vector_store %arg3[%c0_7, %c0_8], %20 {strides = array<i32>} : memref<8x256xf32, #tpu.memory_space<vmem>>, vector<8x256xf32>,
    return
  }
  func.func @transform_0(%arg0: i32) -> (i32, i32) {
    %c0_i32 = arith.constant 0 : i32
    %c0_i32_0 = arith.constant 0 : i32
    return %arg0, %c0_i32 : i32, i32
  }
  func.func @transform_1(%arg0: i32) -> (i32, i32) {
    %c0_i32 = arith.constant 0 : i32
    %c0_i32_0 = arith.constant 0 : i32
    %c0_i32_1 = arith.constant 0 : i32
    return %c0_i32, %c0_i32_0 : i32, i32
  }
  func.func @transform_2(%arg0: i32) -> (i32, i32) {
    %c0_i32 = arith.constant 0 : i32
    %c0_i32_0 = arith.constant 0 : i32
    %c0_i32_1 = arith.constant 0 : i32
    return %c0_i32, %c0_i32_0 : i32, i32
  }
}

</mosaic_0001>

<llo_original>
// kernel: tpu_custom_call.1
$region0: #{tpu_custom_call.1}
  #allocation0 [shape = 'u32[]', space=smem, size = 0x4, offset = 0x4, fixed_abs, tag = 'smem constant byte address 0x4 - core index']
  #allocation1 [shape = 'u32[72,128]{1,0:T(1,128)}', space=vmem, size = 0x9000, scoped, tag = 'internal scratch']
  %s0 = inlined_call_operand.hbm [shape: f32[8,256], index: 0, kind: input, shape index: {}]
  %s1 = inlined_call_operand.hbm [shape: f32[1,256], index: 1, kind: input, shape index: {}]
  %s2 = inlined_call_operand.hbm [shape: f32[8,256], index: 2, kind: output, shape index: {}]
  %s3 = sld [smem:[#allocation0]]
  $region30: #{tpu_custom_call.1} parent=0
    _
  %s5 = ssub.s32 1, %s3
  %s6 = scalar_select 0, %s5, %s3
  $region1: #{tpu_custom_call.1} parent=0
    #allocation2 [shape = 'u8[8192]{0}', space=vmem, size = 0x2000, scoped, tag = 'input window, operand 0, single buffered']
    #allocation3 [shape = 's32[1]{0}', space=sflag, size = 0x4, scoped, tag = 'scoped memory for tpu_custom_call.1']
    #allocation4 [shape = 's32[1]{0}', space=sflag, size = 0x4, scoped, tag = 'scoped memory for tpu_custom_call.1']
    #allocation5 [shape = 'u8[1024]{0}', space=vmem, size = 0x400, scoped, tag = 'input window, operand 1, single buffered']
    #allocation6 [shape = 's32[1]{0}', space=sflag, size = 0x4, scoped, tag = 'scoped memory for tpu_custom_call.1']
    #allocation7 [shape = 'u8[8192]{0}', space=vmem, size = 0x2000, scoped, tag = 'output window, operand 0, single buffered']
    %7 = vsyncpa [#allocation3], 0
    %8 = vsyncpa [#allocation6], 0
    %9 = vsyncpa [#allocation4], 0
    // Predicated region
    $region2: #{tpu_custom_call.1} parent=1 // pred_check
      _
    $region3: #{tpu_custom_call.1} parent=1 // pred_check_branch
      %11 = sbr.rel (0) target = $region5
    $region4: #{tpu_custom_call.1} parent=1 // pred_region
      %13 = vsyncadd [#allocation3], 0
      %s15 = sshll.u32 %s0, 4
      %s16 = int_to_ptr.hbm [resolvable:$true] %s15
      %s17 = sshll.u32 [#allocation2], 4
      %s18 = int_to_ptr.vmem [resolvable:$true] %s17
      %20 = dma.hbm_to_vmem [thread:$0]  %s16, 256, %s18, [#allocation3]
    $region5: #{tpu_custom_call.1} parent=1 // pred_fallthru
      _
    // Predicated region
    $region6: #{tpu_custom_call.1} parent=1 // pred_check
      _
    $region7: #{tpu_custom_call.1} parent=1 // pred_check_branch
      %22 = sbr.rel (0) target = $region9
    $region8: #{tpu_custom_call.1} parent=1 // pred_region
      %24 = vsyncadd [#allocation6], 0
      %s26 = sshll.u32 %s1, 4
      %s27 = int_to_ptr.hbm [resolvable:$true] %s26
      %s28 = sshll.u32 [#allocation5], 4
      %s29 = int_to_ptr.vmem [resolvable:$true] %s28
      %31 = dma.hbm_to_vmem [thread:$0]  %s27, 32, %s29, [#allocation6]
    $region9: #{tpu_custom_call.1} parent=1 // pred_fallthru
      _
    // Predicated region
    $region10: #{tpu_custom_call.1} parent=1 // pred_check
      _
    $region11: #{tpu_custom_call.1} parent=1 // pred_check_branch
      %33 = sbr.rel (0) target = $region13
    $region12: #{tpu_custom_call.1} parent=1 // pred_region
      %35 = dma.done [#allocation3], 256
    $region13: #{tpu_custom_call.1} parent=1 // pred_fallthru
      _
    // Predicated region
    $region14: #{tpu_custom_call.1} parent=1 // pred_check
      _
    $region15: #{tpu_custom_call.1} parent=1 // pred_check_branch
      %37 = sbr.rel (0) target = $region17
    $region16: #{tpu_custom_call.1} parent=1 // pred_region
      %39 = dma.done [#allocation6], 32
    $region17: #{tpu_custom_call.1} parent=1 // pred_fallthru
      _
    %p40 = scmp.eq.s32.totalorder 0, 0
    // Predicated region
    $region18: #{tpu_custom_call.1} parent=1 // pred_check
      %p41 = pneg %p40
    $region19: #{tpu_custom_call.1} parent=1 // pred_check_branch
      %43 = sbr.rel (%p41) target = $region21
    $region20: #{tpu_custom_call.1} parent=1 // pred_region
      %44 = vst [vmem:[#allocation7] sm:$0xff] 0.0
      %45 = vst [vmem:[#allocation7 + $0x8] sm:$0xff] 0.0
    $region21: #{tpu_custom_call.1} parent=1 // pred_fallthru
      _
    %v46 = vld [vmem:[#allocation2] sm:$0xff]
    %v47 = vld [vmem:[#allocation2 + $0x8] sm:$0xff]
    %48 = vrot.lane.b32.xlu0 %v46, 127
    %v49 = vpop.permute.xlu0 %48
    %50 = vrot.lane.b32.xlu0 %v47, 127
    %v51 = vpop.permute.xlu0 %50
    %v52 = vlaneseq
    %v53 = vand.u32 %v52, 127
    %vm54 = vcmp.lt.s32.totalorder %v53, 127
    %v55 = vsel %vm54, %v49, %v51
    %v56 = vsel %vm54, %v51, %v49
    %57 = vrot.lane.b32.xlu0 %v46, 112
    %v58 = vpop.permute.xlu0 %57
    %59 = vrot.lane.b32.xlu0 %v47, 112
    %v60 = vpop.permute.xlu0 %59
    %vm61 = vcmp.lt.s32.totalorder %v53, 112
    %v62 = vsel %vm61, %v58, %v60
    %v63 = vsel %vm61, %v60, %v58
    %v64 = vsub.f32 %v46, %v55
    %v65 = vsub.f32 %v47, %v56
    %v66 = vsub.f32 %v46, %v62
    %v67 = vsub.f32 %v47, %v63
    %v68 = vmul.f32 %v64, %v64
    %v69 = vmul.f32 %v65, %v65
    %v70 = vmul.f32 %v66, %v66
    %v71 = vmul.f32 %v67, %v67
    %v72 = vadd.f32 %v68, %v70
    %v73 = vadd.f32 %v69, %v71
    %v74 = vadd.f32 %v72, 1.0
    %v75 = vadd.f32 %v73, 1.0
    %v76 = vlog2.pop %v74
    %v77 = vmul.f32 %v76, 0.6931472
    %v78 = vlog2.pop %v75
    %v79 = vmul.f32 %v78, 0.6931472
    %v80 = vld [vmem:[#allocation5] sm:$0x3]
    %v82 = vperm.slane %v80, 0
    %v83 = vperm.slane %v80, 1
    %v86 = vmul.f32 %v77, %v82
    %v87 = vmul.f32 %v79, %v83
    %v88 = vld [vmem:[#allocation7] sm:$0xff]
    %v89 = vld [vmem:[#allocation7 + $0x8] sm:$0xff]
    %v90 = vadd.f32 %v86, 0.0
    %v91 = vadd.f32 %v87, 0.0
    %v92 = vadd.f32 %v88, %v90
    %v93 = vadd.f32 %v89, %v91
    %94 = vst [vmem:[#allocation7] sm:$0xff] %v92
    %95 = vst [vmem:[#allocation7 + $0x8] sm:$0xff] %v93
    // Predicated region
    $region22: #{tpu_custom_call.1} parent=1 // pred_check
      _
    $region23: #{tpu_custom_call.1} parent=1 // pred_check_branch
      %97 = sbr.rel (0) target = $region25
    $region24: #{tpu_custom_call.1} parent=1 // pred_region
      %99 = vsyncadd [#allocation4], 0
      %s101 = sshll.u32 [#allocation7], 4
      %s102 = int_to_ptr.vmem [resolvable:$true] %s101
      %s103 = sshll.u32 %s2, 4
      %s104 = int_to_ptr.hbm [resolvable:$true] %s103
      %106 = dma.vmem_to_hbm [thread:$0]  %s102, 256, %s104, [#allocation4]
    $region25: #{tpu_custom_call.1} parent=1 // pred_fallthru
      _
    // Predicated region
    $region26: #{tpu_custom_call.1} parent=1 // pred_check
      _
    $region27: #{tpu_custom_call.1} parent=1 // pred_check_branch
      %108 = sbr.rel (0) target = $region29
    $region28: #{tpu_custom_call.1} parent=1 // pred_region
      %110 = dma.done [#allocation4], 256
    $region29: #{tpu_custom_call.1} parent=1 // pred_fallthru
      _
    %111 = vsyncpa [#allocation3], 1
    %112 = vsyncpa [#allocation6], 1
    %113 = vsyncpa [#allocation4], 1

</llo_original>
